<compile_context>
chip_gen: v7x
topology: tpu7x:2x2x1
jax: 0.10.0
libtpu: 0.0.40
codegen_flags: <defaults>
</compile_context>

<pallas_src>
import jax
import jax.numpy as jnp
from jax.experimental import pallas as pl
from jax.experimental.pallas import tpu as pltpu

_LANES = 128  # TPU lane width; output slab is lane-dense at this width.


def _round_up(x: int, m: int) -> int:
    return (x + m - 1) // m * m


def _make_kernel(num_layers: int, act_n: int, tile_b: int):
    """Kernel for an MLP with `num_layers` Linear layers + Gumbel-max sampling."""

    def kernel(obs_ref, gumbel_ref, *refs):
        wb_refs = refs[: 2 * num_layers]
        out_ref = refs[2 * num_layers]

        # ---- MLP hot path: bf16 MXU matmuls, f32 bias-add / tanh ----
        h = obs_ref[...]                                  # (tile_b, obs_dim) bf16
        for i in range(num_layers):
            w = wb_refs[2 * i][...]                       # (in, out) bf16
            b = wb_refs[2 * i + 1][...]                   # (1, out)  f32
            h = jnp.dot(h, w, preferred_element_type=jnp.float32) + b
            if i < num_layers - 1:                        # Tanh on hidden layers only
                h = jnp.tanh(h).astype(jnp.bfloat16)      # bf16 operands for next MXU pass
        logits = h                                        # (tile_b, act_n) f32

        # ---- log-softmax in f32 (normalized logits, as in torch Categorical) ----
        m = jnp.max(logits, axis=-1, keepdims=True)
        z = logits - m
        lse = jnp.log(jnp.sum(jnp.exp(z), axis=-1, keepdims=True))
        log_probs = z - lse                               # (tile_b, act_n), all <= 0

        # ---- Gumbel-max sampling (noise supplied per batch tile via gumbel_ref) ----
        g = gumbel_ref[...]                               # (tile_b, act_n) f32
        scores = log_probs + g
        smax = jnp.max(scores, axis=-1, keepdims=True)
        ids = jax.lax.broadcasted_iota(jnp.int32, scores.shape, 1)
        # argmax = smallest index achieving the max score (tie-break like argmax)
        a = jnp.min(jnp.where(scores == smax, ids, act_n), axis=-1, keepdims=True)

        # gather log_prob at sampled action via one-hot masked sum
        onehot = ids == a
        logp = jnp.sum(jnp.where(onehot, log_probs, 0.0), axis=-1, keepdims=True)

        # ---- lane-dense packed output: lanes [0,64) action(f32), [64,128) logp ----
        lane = jax.lax.broadcasted_iota(jnp.int32, (tile_b, _LANES), 1)
        a_f32 = a.astype(jnp.float32)                     # act_n is tiny -> exact in f32
        out_ref[...] = jnp.where(lane < _LANES // 2, a_f32, logp)

    return kernel


def categorical_policy_forward(obs, params, sample_key, *, tile_b: int = 256):
    """obs: (B, obs_dim) f32; params: list of (W(in,out), b(out,)).

    Returns (a: (B,) int32, logp: (B,) f32)."""
    B, obs_dim = obs.shape
    num_layers = len(params)
    act_n = params[-1][0].shape[1]

    # Batch tile: largest of tile_b that is still useful; keep it a multiple of 8.
    tile_b = min(tile_b, _round_up(max(B, 1), 8))
    b_pad = _round_up(B, tile_b)
    grid = (b_pad // tile_b,)

    obs_p = jnp.zeros((b_pad, obs_dim), jnp.bfloat16).at[:B].set(obs.astype(jnp.bfloat16))
    # Gumbel noise generated host-side; blocked per tile -> independent noise per tile.
    gumbel = jax.random.gumbel(sample_key, (b_pad, act_n), jnp.float32)

    args = [obs_p, gumbel]
    in_specs = [
        pl.BlockSpec((tile_b, obs_dim), lambda i: (i, 0)),
        pl.BlockSpec((tile_b, act_n), lambda i: (i, 0)),
    ]
    for w, b in params:
        w_bf16 = w.astype(jnp.bfloat16)                   # bf16 MXU operand
        b_f32 = b.astype(jnp.float32).reshape(1, -1)      # f32 bias
        args.append(w_bf16)
        args.append(b_f32)
        # Constant index_map -> weights/biases stay resident in VMEM across the grid.
        in_specs.append(pl.BlockSpec(w_bf16.shape, lambda i: (0, 0)))
        in_specs.append(pl.BlockSpec(b_f32.shape, lambda i: (0, 0)))

    out_shape = jax.ShapeDtypeStruct((b_pad, _LANES), jnp.float32)
    out_specs = pl.BlockSpec((tile_b, _LANES), lambda i: (i, 0))

    # VMEM budget: 2x double-buffered I/O tiles + resident weights + activation headroom.
    weight_bytes = sum(w.size * 2 + b.size * 4 for w, b in params)
    io_bytes = 2 * (tile_b * obs_dim * 2 + tile_b * act_n * 4 + tile_b * _LANES * 4)
    widest = max([obs_dim, _LANES] + [w.shape[1] for w, _ in params])
    act_bytes = 8 * tile_b * widest * 4
    vmem_limit = min(int(1.25 * (weight_bytes + io_bytes + act_bytes)) + (4 << 20),
                     64 << 20)

    out = pl.pallas_call(
        _make_kernel(num_layers, act_n, tile_b),
        grid=grid,
        in_specs=in_specs,
        out_specs=out_specs,
        out_shape=out_shape,
        compiler_params=pltpu.CompilerParams(
            dimension_semantics=("parallel",),     # shards batch tiles on v7x dual-TC
            vmem_limit_bytes=vmem_limit,
        ),
    )(*args)

    a = out[:B, 0].astype(jnp.int32)
    logp = out[:B, _LANES // 2]
    return a, logp


def init_mlp_params(key, sizes):
    """Deterministic init mimicking torch.nn.Linear default (U[-1/sqrt(fan_in), +])."""
    params = []
    for fan_in, fan_out in zip(sizes[:-1], sizes[1:]):
        key, kw, kb = jax.random.split(key, 3)
        bound = 1.0 / jnp.sqrt(float(fan_in))
        w = jax.random.uniform(kw, (fan_in, fan_out), jnp.float32, -bound, bound)
        b = jax.random.uniform(kb, (fan_out,), jnp.float32, -bound, bound)
        params.append((w, b))
    return params


if __name__ == "__main__":
    B, obs_dim, act_n = 8, 32, 8
    hidden_sizes = [32, 32]

    key = jax.random.PRNGKey(0)
    key, k_obs, k_params, k_sample = jax.random.split(key, 4)
    obs = jax.random.normal(k_obs, (B, obs_dim), jnp.float32)
    params = init_mlp_params(k_params, [obs_dim] + hidden_sizes + [act_n])

    a, logp = categorical_policy_forward(obs, params, k_sample)
    jax.block_until_ready((a, logp))

    # Reference check for log_prob at the sampled action (sampling itself is stochastic).
    # Mirror the kernel's bf16-operand / f32-accumulate matmuls.
    h = obs.astype(jnp.bfloat16)
    for i, (w, b) in enumerate(params):
        h = jnp.dot(h, w.astype(jnp.bfloat16), preferred_element_type=jnp.float32) + b
        if i < len(params) - 1:
            h = jnp.tanh(h).astype(jnp.bfloat16)
    ref_log_probs = jax.nn.log_softmax(h, axis=-1)
    ref_logp = jnp.take_along_axis(ref_log_probs, a[:, None], axis=-1)[:, 0]

    assert a.shape == (B,) and a.dtype == jnp.int32
    assert bool(jnp.all((a >= 0) & (a < act_n)))
    assert bool(jnp.all(logp <= 1e-5))
    assert bool(jnp.allclose(logp, ref_logp, atol=5e-3))

    print("KERNEL_OK")
</pallas_src>

<mosaic_0001>
module attributes {stable_mosaic.version = 11 : i64} {
  func.func @kernel(%arg0: i32, %arg1: memref<8x32xbf16, #tpu.memory_space<vmem>>, %arg2: memref<8x8xf32, #tpu.memory_space<vmem>>, %arg3: memref<32x32xbf16, #tpu.memory_space<vmem>>, %arg4: memref<1x32xf32, #tpu.memory_space<vmem>>, %arg5: memref<32x32xbf16, #tpu.memory_space<vmem>>, %arg6: memref<1x32xf32, #tpu.memory_space<vmem>>, %arg7: memref<32x8xbf16, #tpu.memory_space<vmem>>, %arg8: memref<1x8xf32, #tpu.memory_space<vmem>>, %arg9: memref<8x128xf32, #tpu.memory_space<vmem>>) attributes {dimension_semantics = [#tpu.dimension_semantics<parallel>], iteration_bounds = array<i64: 1>, scalar_prefetch = 0 : i64, scratch_operands = 0 : i64, tpu.core_type = #tpu.core_type<tc>, window_params = [{transform_indices = @transform_0, window_bounds = array<i64: 8, 32>}, {transform_indices = @transform_1, window_bounds = array<i64: 8, 8>}, {pipeline_mode = #tpu.pipeline_mode<synchronous>, transform_indices = @transform_2, window_bounds = array<i64: 32, 32>}, {pipeline_mode = #tpu.pipeline_mode<synchronous>, transform_indices = @transform_3, window_bounds = array<i64: 1, 32>}, {pipeline_mode = #tpu.pipeline_mode<synchronous>, transform_indices = @transform_4, window_bounds = array<i64: 32, 32>}, {pipeline_mode = #tpu.pipeline_mode<synchronous>, transform_indices = @transform_5, window_bounds = array<i64: 1, 32>}, {pipeline_mode = #tpu.pipeline_mode<synchronous>, transform_indices = @transform_6, window_bounds = array<i64: 32, 8>}, {pipeline_mode = #tpu.pipeline_mode<synchronous>, transform_indices = @transform_7, window_bounds = array<i64: 1, 8>}, {transform_indices = @transform_8, window_bounds = array<i64: 8, 128>}]} {
    %c0 = arith.constant 0 : index
    %c0_0 = arith.constant 0 : index
    %0 = vector.load %arg1[%c0, %c0_0] : memref<8x32xbf16, #tpu.memory_space<vmem>>, vector<8x32xbf16>
    %c0_1 = arith.constant 0 : index
    %c0_2 = arith.constant 0 : index
    %1 = vector.load %arg3[%c0_1, %c0_2] : memref<32x32xbf16, #tpu.memory_space<vmem>>, vector<32x32xbf16>
    %c0_3 = arith.constant 0 : index
    %c0_4 = arith.constant 0 : index
    %2 = vector.load %arg4[%c0_3, %c0_4] : memref<1x32xf32, #tpu.memory_space<vmem>>, vector<1x32xf32>
    %cst = arith.constant dense<0.000000e+00> : vector<8x32xf32>
    %3 = tpu.matmul %0, %1, %cst {dimension_numbers = #tpu.dot_dimension_numbers<[1], [0], [0], [1], [0, 0, 1, 1], [], []>} : vector<8x32xbf16>, vector<32x32xbf16>, vector<8x32xf32> -> vector<8x32xf32>
    %4 = vector.broadcast %2 : vector<1x32xf32> to vector<8x32xf32>
    %5 = arith.addf %3, %4 : vector<8x32xf32>
    %6 = math.tanh %5 : vector<8x32xf32>
    %7 = arith.truncf %6 : vector<8x32xf32> to vector<8x32xbf16>
    %c0_5 = arith.constant 0 : index
    %c0_6 = arith.constant 0 : index
    %8 = vector.load %arg5[%c0_5, %c0_6] : memref<32x32xbf16, #tpu.memory_space<vmem>>, vector<32x32xbf16>
    %c0_7 = arith.constant 0 : index
    %c0_8 = arith.constant 0 : index
    %9 = vector.load %arg6[%c0_7, %c0_8] : memref<1x32xf32, #tpu.memory_space<vmem>>, vector<1x32xf32>
    %cst_9 = arith.constant dense<0.000000e+00> : vector<8x32xf32>
    %10 = tpu.matmul %7, %8, %cst_9 {dimension_numbers = #tpu.dot_dimension_numbers<[1], [0], [0], [1], [0, 0, 1, 1], [], []>} : vector<8x32xbf16>, vector<32x32xbf16>, vector<8x32xf32> -> vector<8x32xf32>
    %11 = vector.broadcast %9 : vector<1x32xf32> to vector<8x32xf32>
    %12 = arith.addf %10, %11 : vector<8x32xf32>
    %13 = math.tanh %12 : vector<8x32xf32>
    %14 = arith.truncf %13 : vector<8x32xf32> to vector<8x32xbf16>
    %c0_10 = arith.constant 0 : index
    %c0_11 = arith.constant 0 : index
    %15 = vector.load %arg7[%c0_10, %c0_11] : memref<32x8xbf16, #tpu.memory_space<vmem>>, vector<32x8xbf16>
    %c0_12 = arith.constant 0 : index
    %c0_13 = arith.constant 0 : index
    %16 = vector.load %arg8[%c0_12, %c0_13] : memref<1x8xf32, #tpu.memory_space<vmem>>, vector<1x8xf32>
    %cst_14 = arith.constant dense<0.000000e+00> : vector<8x8xf32>
    %17 = tpu.matmul %14, %15, %cst_14 {dimension_numbers = #tpu.dot_dimension_numbers<[1], [0], [0], [1], [0, 0, 1, 1], [], []>} : vector<8x32xbf16>, vector<32x8xbf16>, vector<8x8xf32> -> vector<8x8xf32>
    %18 = vector.broadcast %16 : vector<1x8xf32> to vector<8x8xf32>
    %19 = arith.addf %17, %18 : vector<8x8xf32>
    %cst_15 = arith.constant dense<0xFF800000> : vector<8xf32>
    %20 = vector.multi_reduction <maximumf>, %19, %cst_15 [1] : vector<8x8xf32> to vector<8xf32>
    %21 = vector.shape_cast %20 : vector<8xf32> to vector<8x1xf32>
    %22 = vector.broadcast %21 : vector<8x1xf32> to vector<8x8xf32>
    %23 = arith.subf %19, %22 : vector<8x8xf32>
    %24 = math.exp %23 : vector<8x8xf32>
    %cst_16 = arith.constant dense<0.000000e+00> : vector<8xf32>
    %25 = vector.multi_reduction <add>, %24, %cst_16 [1] : vector<8x8xf32> to vector<8xf32>
    %26 = vector.shape_cast %25 : vector<8xf32> to vector<8x1xf32>
    %27 = math.log %26 : vector<8x1xf32>
    %28 = vector.broadcast %27 : vector<8x1xf32> to vector<8x8xf32>
    %29 = arith.subf %23, %28 : vector<8x8xf32>
    %c0_17 = arith.constant 0 : index
    %c0_18 = arith.constant 0 : index
    %30 = vector.load %arg2[%c0_17, %c0_18] : memref<8x8xf32, #tpu.memory_space<vmem>>, vector<8x8xf32>
    %31 = arith.addf %29, %30 : vector<8x8xf32>
    %cst_19 = arith.constant dense<0xFF800000> : vector<8xf32>
    %32 = vector.multi_reduction <maximumf>, %31, %cst_19 [1] : vector<8x8xf32> to vector<8xf32>
    %33 = vector.shape_cast %32 : vector<8xf32> to vector<8x1xf32>
    %34 = tpu.iota {dimensions = array<i32: 1>} : vector<8x8xi32>
    %35 = vector.broadcast %33 : vector<8x1xf32> to vector<8x8xf32>
    %36 = arith.cmpf oeq, %31, %35 : vector<8x8xf32>
    %c8_i32 = arith.constant 8 : i32
    %37 = vector.broadcast %c8_i32 : i32 to vector<8x8xi32>
    %38 = arith.select %36, %34, %37 : vector<8x8xi1>, vector<8x8xi32>
    %cst_20 = arith.constant dense<2147483647> : vector<8xi32>
    %39 = vector.multi_reduction <minsi>, %38, %cst_20 [1] : vector<8x8xi32> to vector<8xi32>
    %40 = vector.shape_cast %39 : vector<8xi32> to vector<8x1xi32>
    %41 = vector.broadcast %40 : vector<8x1xi32> to vector<8x8xi32>
    %42 = arith.cmpi eq, %34, %41 : vector<8x8xi32>
    %cst_21 = arith.constant 0.000000e+00 : f32
    %43 = vector.broadcast %cst_21 : f32 to vector<8x8xf32>
    %44 = arith.select %42, %29, %43 : vector<8x8xi1>, vector<8x8xf32>
    %cst_22 = arith.constant dense<0.000000e+00> : vector<8xf32>
    %45 = vector.multi_reduction <add>, %44, %cst_22 [1] : vector<8x8xf32> to vector<8xf32>
    %46 = vector.shape_cast %45 : vector<8xf32> to vector<8x1xf32>
    %47 = tpu.iota {dimensions = array<i32: 1>} : vector<8x128xi32>
    %48 = arith.sitofp %40 : vector<8x1xi32> to vector<8x1xf32>
    %c64_i32 = arith.constant 64 : i32
    %49 = vector.broadcast %c64_i32 : i32 to vector<8x128xi32>
    %50 = arith.cmpi slt, %47, %49 : vector<8x128xi32>
    %51 = vector.shape_cast %48 : vector<8x1xf32> to vector<8x1xf32>
    %52 = vector.broadcast %51 : vector<8x1xf32> to vector<8x128xf32>
    %53 = vector.shape_cast %46 : vector<8x1xf32> to vector<8x1xf32>
    %54 = vector.broadcast %53 : vector<8x1xf32> to vector<8x128xf32>
    %55 = arith.select %50, %52, %54 : vector<8x128xi1>, vector<8x128xf32>
    %c0_23 = arith.constant 0 : index
    %c0_24 = arith.constant 0 : index
    %56 = vector.load %arg9[%c0_23, %c0_24] : memref<8x128xf32, #tpu.memory_space<vmem>>, vector<8x128xf32>
    tpu.vector_store %arg9[%c0_23, %c0_24], %55 {strides = array<i32>} : memref<8x128xf32, #tpu.memory_space<vmem>>, vector<8x128xf32>,
    return
  }
  func.func @transform_0(%arg0: i32) -> (i32, i32) {
    %c0_i32 = arith.constant 0 : i32
    %c0_i32_0 = arith.constant 0 : i32
    return %arg0, %c0_i32 : i32, i32
  }
  func.func @transform_1(%arg0: i32) -> (i32, i32) {
    %c0_i32 = arith.constant 0 : i32
    %c0_i32_0 = arith.constant 0 : i32
    return %arg0, %c0_i32 : i32, i32
  }
  func.func @transform_2(%arg0: i32) -> (i32, i32) {
    %c0_i32 = arith.constant 0 : i32
    %c0_i32_0 = arith.constant 0 : i32
    %c0_i32_1 = arith.constant 0 : i32
    return %c0_i32, %c0_i32_0 : i32, i32
  }
  func.func @transform_3(%arg0: i32) -> (i32, i32) {
    %c0_i32 = arith.constant 0 : i32
    %c0_i32_0 = arith.constant 0 : i32
    %c0_i32_1 = arith.constant 0 : i32
    return %c0_i32, %c0_i32_0 : i32, i32
  }
  func.func @transform_4(%arg0: i32) -> (i32, i32) {
    %c0_i32 = arith.constant 0 : i32
    %c0_i32_0 = arith.constant 0 : i32
    %c0_i32_1 = arith.constant 0 : i32
    return %c0_i32, %c0_i32_0 : i32, i32
  }
  func.func @transform_5(%arg0: i32) -> (i32, i32) {
    %c0_i32 = arith.constant 0 : i32
    %c0_i32_0 = arith.constant 0 : i32
    %c0_i32_1 = arith.constant 0 : i32
    return %c0_i32, %c0_i32_0 : i32, i32
  }
  func.func @transform_6(%arg0: i32) -> (i32, i32) {
    %c0_i32 = arith.constant 0 : i32
    %c0_i32_0 = arith.constant 0 : i32
    %c0_i32_1 = arith.constant 0 : i32
    return %c0_i32, %c0_i32_0 : i32, i32
  }
  func.func @transform_7(%arg0: i32) -> (i32, i32) {
    %c0_i32 = arith.constant 0 : i32
    %c0_i32_0 = arith.constant 0 : i32
    %c0_i32_1 = arith.constant 0 : i32
    return %c0_i32, %c0_i32_0 : i32, i32
  }
  func.func @transform_8(%arg0: i32) -> (i32, i32) {
    %c0_i32 = arith.constant 0 : i32
    %c0_i32_0 = arith.constant 0 : i32
    return %arg0, %c0_i32 : i32, i32
  }
}

</mosaic_0001>

<llo_original>
// kernel: tpu_custom_call.1
$region0: #{tpu_custom_call.1}
  #allocation0 [shape = 'u32[]', space=smem, size = 0x4, offset = 0x4, fixed_abs, tag = 'smem constant byte address 0x4 - core index']
  #allocation1 [shape = 'u32[144,128]{1,0:T(1,128)}', space=vmem, size = 0x12000, scoped, tag = 'internal scratch']
  %s0 = inlined_call_operand.hbm [shape: bf16[8,32], index: 0, kind: input, shape index: {}]
  %s1 = inlined_call_operand.hbm [shape: f32[8,8], index: 1, kind: input, shape index: {}]
  %s2 = inlined_call_operand.vmem [shape: bf16[32,32], index: 2, kind: input, shape index: {}]
  %s3 = inlined_call_operand.vmem [shape: f32[1,32], index: 3, kind: input, shape index: {}]
  %s4 = inlined_call_operand.vmem [shape: bf16[32,32], index: 4, kind: input, shape index: {}]
  %s5 = inlined_call_operand.vmem [shape: f32[1,32], index: 5, kind: input, shape index: {}]
  %s6 = inlined_call_operand.vmem [shape: bf16[32,8], index: 6, kind: input, shape index: {}]
  %s7 = inlined_call_operand.vmem [shape: f32[1,8], index: 7, kind: input, shape index: {}]
  %s8 = inlined_call_operand.hbm [shape: f32[8,128], index: 8, kind: output, shape index: {}]
  %s9 = sld [smem:[#allocation0]]
  $region50: #{tpu_custom_call.1} parent=0
    _
  %s11 = ssub.s32 1, %s9
  %s12 = scalar_select 0, %s11, %s9
  $region1: #{tpu_custom_call.1} parent=0
    #allocation2 [shape = 'u8[2048]{0}', space=vmem, size = 0x800, scoped, tag = 'input window, operand 0, single buffered']
    #allocation3 [shape = 's32[1]{0}', space=sflag, size = 0x4, scoped, tag = 'scoped memory for tpu_custom_call.1']
    #allocation4 [shape = 's32[1]{0}', space=sflag, size = 0x4, scoped, tag = 'scoped memory for tpu_custom_call.1']
    #allocation5 [shape = 'u8[4096]{0}', space=vmem, size = 0x1000, scoped, tag = 'input window, operand 1, single buffered']
    #allocation6 [shape = 's32[1]{0}', space=sflag, size = 0x4, scoped, tag = 'scoped memory for tpu_custom_call.1']
    #allocation7 [shape = 'u8[4096]{0}', space=vmem, size = 0x1000, scoped, tag = 'output window, operand 0, single buffered']
    %13 = vsyncpa [#allocation3], 0
    %14 = vsyncpa [#allocation6], 0
    %15 = vsyncpa [#allocation4], 0
    // Predicated region
    $region2: #{tpu_custom_call.1} parent=1 // pred_check
      _
    $region3: #{tpu_custom_call.1} parent=1 // pred_check_branch
      %17 = sbr.rel (0) target = $region5
    $region4: #{tpu_custom_call.1} parent=1 // pred_region
      %s19 = ssub.s32 64, 64
      %20 = vsyncadd [#allocation3], %s19
      %s22 = sshll.u32 [#allocation2], 4
      %s23 = int_to_ptr.vmem [resolvable:$true] %s22
      %25 = dma.hbm_to_vmem [thread:$0]  %s0, 64, %s23, [#allocation3]
    $region5: #{tpu_custom_call.1} parent=1 // pred_fallthru
      _
    // Predicated region
    $region6: #{tpu_custom_call.1} parent=1 // pred_check
      _
    $region7: #{tpu_custom_call.1} parent=1 // pred_check_branch
      %27 = sbr.rel (0) target = $region9
    $region8: #{tpu_custom_call.1} parent=1 // pred_region
      %s29 = ssub.s32 128, 128
      %30 = vsyncadd [#allocation6], %s29
      %s32 = sshll.u32 [#allocation5], 4
      %s33 = int_to_ptr.vmem [resolvable:$true] %s32
      %35 = dma.hbm_to_vmem [thread:$0]  %s1, 128, %s33, [#allocation6]
    $region9: #{tpu_custom_call.1} parent=1 // pred_fallthru
      _
    // Predicated region
    $region10: #{tpu_custom_call.1} parent=1 // pred_check
      _
    $region11: #{tpu_custom_call.1} parent=1 // pred_check_branch
      %37 = sbr.rel (0) target = $region13
    $region12: #{tpu_custom_call.1} parent=1 // pred_region
      _
    $region13: #{tpu_custom_call.1} parent=1 // pred_fallthru
      _
    // Predicated region
    $region14: #{tpu_custom_call.1} parent=1 // pred_check
      _
    $region15: #{tpu_custom_call.1} parent=1 // pred_check_branch
      %39 = sbr.rel (0) target = $region17
    $region16: #{tpu_custom_call.1} parent=1 // pred_region
      _
    $region17: #{tpu_custom_call.1} parent=1 // pred_fallthru
      _
    // Predicated region
    $region18: #{tpu_custom_call.1} parent=1 // pred_check
      _
    $region19: #{tpu_custom_call.1} parent=1 // pred_check_branch
      %41 = sbr.rel (0) target = $region21
    $region20: #{tpu_custom_call.1} parent=1 // pred_region
      _
    $region21: #{tpu_custom_call.1} parent=1 // pred_fallthru
      _
    // Predicated region
    $region22: #{tpu_custom_call.1} parent=1 // pred_check
      _
    $region23: #{tpu_custom_call.1} parent=1 // pred_check_branch
      %43 = sbr.rel (0) target = $region25
    $region24: #{tpu_custom_call.1} parent=1 // pred_region
      _
    $region25: #{tpu_custom_call.1} parent=1 // pred_fallthru
      _
    // Predicated region
    $region26: #{tpu_custom_call.1} parent=1 // pred_check
      _
    $region27: #{tpu_custom_call.1} parent=1 // pred_check_branch
      %45 = sbr.rel (0) target = $region29
    $region28: #{tpu_custom_call.1} parent=1 // pred_region
      _
    $region29: #{tpu_custom_call.1} parent=1 // pred_fallthru
      _
    // Predicated region
    $region30: #{tpu_custom_call.1} parent=1 // pred_check
      _
    $region31: #{tpu_custom_call.1} parent=1 // pred_check_branch
      %47 = sbr.rel (0) target = $region33
    $region32: #{tpu_custom_call.1} parent=1 // pred_region
      _
    $region33: #{tpu_custom_call.1} parent=1 // pred_fallthru
      _
    // Predicated region
    $region34: #{tpu_custom_call.1} parent=1 // pred_check
      _
    $region35: #{tpu_custom_call.1} parent=1 // pred_check_branch
      %49 = sbr.rel (0) target = $region37
    $region36: #{tpu_custom_call.1} parent=1 // pred_region
      %50 = dma.done [#allocation3], 64
    $region37: #{tpu_custom_call.1} parent=1 // pred_fallthru
      _
    // Predicated region
    $region38: #{tpu_custom_call.1} parent=1 // pred_check
      _
    $region39: #{tpu_custom_call.1} parent=1 // pred_check_branch
      %52 = sbr.rel (0) target = $region41
    $region40: #{tpu_custom_call.1} parent=1 // pred_region
      %53 = dma.done [#allocation6], 128
    $region41: #{tpu_custom_call.1} parent=1 // pred_fallthru
      _
    %v55 = vld [vmem:[#allocation2] sm:$0xf]
    %v56 = vld [vmem:[%s2] sm:$0xf]
    %v57 = vld [vmem:[%s2 + $0x4] sm:$0xf]
    %v58 = vld [vmem:[%s2 + $0x8] sm:$0xf]
    %v59 = vld [vmem:[%s2 + $0xc] sm:$0xf]
    %v60 = vld [vmem:[%s3] sm:$0x1]
    %v62 = vlaneseq
    %v63 = vshrl.u32 %v62, 7
    %v64 = vsub.s32 0, %v63
    %v65 = vrot.slane %v60, %v64
    %v71 = vunpack.c.l.b16 %v56
    %v72 = vunpack.c.l.b16 %v57
    %v73 = vunpack.c.l.b16 %v58
    %v74 = vunpack.c.l.b16 %v59
    %v75 = vpack.c.b16 %v72, %v71
    %v76 = vpack.c.b16 %v74, %v73
    %vm79 = vcmask 261120
    %v81 = vsel %vm79, %v55, 0
    %83 = vmatprep.subr.bf16.mxu0 0
    %84 = vmatpush1.bf16.msra.mxu0 %v75
    %85 = vmatprep.subr.bf16.mxu0 0
    %86 = vmatpush1.bf16.msra.mxu0 %v76
    %87 = vmatprep.subr.bf16.mxu0 0
    %88 = vmatpush1.bf16.msra.mxu0 0
    %89 = vmatprep.subr.bf16.mxu0 0
    %90 = vmatpush1.bf16.msra.mxu0 0
    %91 = vmatprep.subr.bf16.mxu0 0
    %92 = vmatpush1.bf16.msra.mxu0 0
    %93 = vmatprep.subr.bf16.mxu0 0
    %94 = vmatpush1.bf16.msra.mxu0 0
    %95 = vmatprep.subr.bf16.mxu0 0
    %96 = vmatpush1.bf16.msra.mxu0 0
    %97 = vmatprep.subr.bf16.mxu0 0
    %98 = vmatpush1.bf16.msra.mxu0 0
    %99 = vmatprep.subr.bf16.mxu0 0
    %100 = vmatpush1.bf16.msra.mxu0 0
    %101 = vmatprep.subr.bf16.mxu0 0
    %102 = vmatpush1.bf16.msra.mxu0 0
    %103 = vmatprep.subr.bf16.mxu0 0
    %104 = vmatpush1.bf16.msra.mxu0 0
    %105 = vmatprep.subr.bf16.mxu0 0
    %106 = vmatpush1.bf16.msra.mxu0 0
    %107 = vmatprep.subr.bf16.mxu0 0
    %108 = vmatpush1.bf16.msra.mxu0 0
    %109 = vmatprep.subr.bf16.mxu0 0
    %110 = vmatpush1.bf16.msra.mxu0 0
    %111 = vmatprep.subr.bf16.mxu0 0
    %112 = vmatpush1.bf16.msra.mxu0 0
    %113 = vmatprep.subr.bf16.mxu0 0
    %114 = vmatpush1.bf16.msra.mxu0 0
    %115 = vmatprep.mubr.bf16.mxu0 0
    %116 = vmatmul.mubr.bf16.gmra.mrb[0].mxu0 %v81
    %v117 = vpop.f32.mrb[0].mxu0
    %v118 = vadd.f32 %v65, %v117
    %v119 = vpop.f32.mrb[0].mxu0
    %v120 = vpop.f32.mrb[0].mxu0
    %v121 = vpop.f32.mrb[0].mxu0
    %122 = vdwg.mxu0
    %v123 = vtanh.pop %v118
    %v124 = vpack.c.bf16 %v123, %v123
    %v125 = vld [vmem:[%s4] sm:$0xf]
    %v126 = vld [vmem:[%s4 + $0x4] sm:$0xf]
    %v127 = vld [vmem:[%s4 + $0x8] sm:$0xf]
    %v128 = vld [vmem:[%s4 + $0xc] sm:$0xf]
    %v129 = vld [vmem:[%s5] sm:$0x1]
    %v131 = vlaneseq
    %v132 = vshrl.u32 %v131, 7
    %v133 = vsub.s32 0, %v132
    %v134 = vrot.slane %v129, %v133
    %v140 = vunpack.c.l.b16 %v125
    %v141 = vunpack.c.l.b16 %v126
    %v142 = vunpack.c.l.b16 %v127
    %v143 = vunpack.c.l.b16 %v128
    %v144 = vpack.c.b16 %v141, %v140
    %v145 = vpack.c.b16 %v143, %v142
    %v149 = vsel %vm79, %v124, 0
    %151 = vmatprep.subr.bf16.mxu0 0
    %152 = vmatpush1.bf16.msra.mxu0 %v144
    %153 = vmatprep.subr.bf16.mxu0 0
    %154 = vmatpush1.bf16.msra.mxu0 %v145
    %155 = vmatprep.subr.bf16.mxu0 0
    %156 = vmatpush1.bf16.msra.mxu0 0
    %157 = vmatprep.subr.bf16.mxu0 0
    %158 = vmatpush1.bf16.msra.mxu0 0
    %159 = vmatprep.subr.bf16.mxu0 0
    %160 = vmatpush1.bf16.msra.mxu0 0
    %161 = vmatprep.subr.bf16.mxu0 0
    %162 = vmatpush1.bf16.msra.mxu0 0
    %163 = vmatprep.subr.bf16.mxu0 0
    %164 = vmatpush1.bf16.msra.mxu0 0
    %165 = vmatprep.subr.bf16.mxu0 0
    %166 = vmatpush1.bf16.msra.mxu0 0
    %167 = vmatprep.subr.bf16.mxu0 0
    %168 = vmatpush1.bf16.msra.mxu0 0
    %169 = vmatprep.subr.bf16.mxu0 0
    %170 = vmatpush1.bf16.msra.mxu0 0
    %171 = vmatprep.subr.bf16.mxu0 0
    %172 = vmatpush1.bf16.msra.mxu0 0
    %173 = vmatprep.subr.bf16.mxu0 0
    %174 = vmatpush1.bf16.msra.mxu0 0
    %175 = vmatprep.subr.bf16.mxu0 0
    %176 = vmatpush1.bf16.msra.mxu0 0
    %177 = vmatprep.subr.bf16.mxu0 0
    %178 = vmatpush1.bf16.msra.mxu0 0
    %179 = vmatprep.subr.bf16.mxu0 0
    %180 = vmatpush1.bf16.msra.mxu0 0
    %181 = vmatprep.subr.bf16.mxu0 0
    %182 = vmatpush1.bf16.msra.mxu0 0
    %183 = vmatprep.mubr.bf16.mxu0 0
    %184 = vmatmul.mubr.bf16.gmra.mrb[0].mxu0 %v149
    %v185 = vpop.f32.mrb[0].mxu0
    %v186 = vadd.f32 %v134, %v185
    %v187 = vpop.f32.mrb[0].mxu0
    %v188 = vpop.f32.mrb[0].mxu0
    %v189 = vpop.f32.mrb[0].mxu0
    %190 = vdwg.mxu0
    %v191 = vtanh.pop %v186
    %v192 = vpack.c.bf16 %v191, %v191
    %v193 = vld [vmem:[%s6] sm:$0xf]
    %v194 = vld [vmem:[%s6 + $0x4] sm:$0xf]
    %v195 = vld [vmem:[%s6 + $0x8] sm:$0xf]
    %v196 = vld [vmem:[%s6 + $0xc] sm:$0xf]
    %v197 = vld [vmem:[%s7] sm:$0x1]
    %v199 = vlaneseq
    %v200 = vshrl.u32 %v199, 7
    %v201 = vsub.s32 0, %v200
    %v202 = vrot.slane %v197, %v201
    %v208 = vunpack.c.l.b16 %v193
    %v209 = vunpack.c.l.b16 %v194
    %v210 = vunpack.c.l.b16 %v195
    %v211 = vunpack.c.l.b16 %v196
    %v212 = vpack.c.b16 %v209, %v208
    %v213 = vpack.c.b16 %v211, %v210
    %v217 = vsel %vm79, %v192, 0
    %219 = vmatprep.subr.bf16.mxu0 0
    %220 = vmatpush1.bf16.msra.mxu0 %v212
    %221 = vmatprep.subr.bf16.mxu0 0
    %222 = vmatpush1.bf16.msra.mxu0 %v213
    %223 = vmatprep.subr.bf16.mxu0 0
    %224 = vmatpush1.bf16.msra.mxu0 0
    %225 = vmatprep.subr.bf16.mxu0 0
    %226 = vmatpush1.bf16.msra.mxu0 0
    %227 = vmatprep.subr.bf16.mxu0 0
    %228 = vmatpush1.bf16.msra.mxu0 0
    %229 = vmatprep.subr.bf16.mxu0 0
    %230 = vmatpush1.bf16.msra.mxu0 0
    %231 = vmatprep.subr.bf16.mxu0 0
    %232 = vmatpush1.bf16.msra.mxu0 0
    %233 = vmatprep.subr.bf16.mxu0 0
    %234 = vmatpush1.bf16.msra.mxu0 0
    %235 = vmatprep.subr.bf16.mxu0 0
    %236 = vmatpush1.bf16.msra.mxu0 0
    %237 = vmatprep.subr.bf16.mxu0 0
    %238 = vmatpush1.bf16.msra.mxu0 0
    %239 = vmatprep.subr.bf16.mxu0 0
    %240 = vmatpush1.bf16.msra.mxu0 0
    %241 = vmatprep.subr.bf16.mxu0 0
    %242 = vmatpush1.bf16.msra.mxu0 0
    %243 = vmatprep.subr.bf16.mxu0 0
    %244 = vmatpush1.bf16.msra.mxu0 0
    %245 = vmatprep.subr.bf16.mxu0 0
    %246 = vmatpush1.bf16.msra.mxu0 0
    %247 = vmatprep.subr.bf16.mxu0 0
    %248 = vmatpush1.bf16.msra.mxu0 0
    %249 = vmatprep.subr.bf16.mxu0 0
    %250 = vmatpush1.bf16.msra.mxu0 0
    %251 = vmatprep.mubr.bf16.mxu0 0
    %252 = vmatmul.mubr.bf16.gmra.mrb[0].mxu0 %v217
    %v253 = vpop.f32.mrb[0].mxu0
    %v254 = vadd.f32 %v202, %v253
    %v255 = vpop.f32.mrb[0].mxu0
    %v256 = vpop.f32.mrb[0].mxu0
    %v257 = vpop.f32.mrb[0].mxu0
    %258 = vdwg.mxu0
    %vm259 = vcmask 64512
    %v260 = vsel %vm259, %v254, -inf
    %261 = vmax.xlane.f32.xlu0 %v260
    %v262 = vpop.xlane.xlu0 %261
    %v263 = vsub.f32 %v254, %v262
    %v264 = vmul.f32 %v263, 1.442695
    %v265 = vpow.pop %v264
    %v266 = vsel %vm259, %v265, 0.0
    %267 = vadd.xlane.f32.xlu0 %v266
    %v268 = vpop.xlane.xlu0 %267
    %v269 = vlog2.pop %v268
    %v270 = vmul.f32 %v269, 0.6931472
    %v271 = vsub.f32 %v263, %v270
    %v272 = vld [vmem:[#allocation5] sm:$0xff]
    %v273 = vadd.f32 %v271, %v272
    %v274 = vsel %vm259, %v273, -inf
    %275 = vmax.xlane.f32.xlu0 %v274
    %v276 = vpop.xlane.xlu0 %275
    %v277 = vlaneseq
    %v278 = vand.u32 %v277, 127
    %vm279 = vcmp.eq.f32.partialorder %v273, %v276
    %v280 = vsel %vm279, %v278, 8
    %v281 = vsel %vm259, %v280, 2147483647
    %v282 = vand.u32 %v281, 65535
    %v283 = vshra.s32 %v281, 16
    %v284 = vcvt.s32.f32 %v282
    %v285 = vcvt.s32.f32 %v283
    %286 = vmin.xlane.f32.xlu0 %v285
    %v287 = vpop.xlane.xlu0 %286
    %vm288 = vcmp.eq.f32.partialorder %v285, %v287
    %v289 = vsel %vm288, %v284, inf
    %290 = vmin.xlane.f32.xlu0 %v289
    %v291 = vpop.xlane.xlu0 %290
    %v292 = vcvt.f32.s32 %v291
    %v293 = vcvt.f32.s32 %v287
    %v294 = vshll.u32 %v293, 16
    %v295 = vadd.s32 %v294, %v292
    %vm296 = vcmp.eq.s32.totalorder %v278, %v295
    %v297 = vsel %vm296, %v271, 0.0
    %v298 = vsel %vm259, %v297, 0.0
    %299 = vadd.xlane.f32.xlu0 %v298
    %v300 = vpop.xlane.xlu0 %299
    %v301 = vcvt.s32.f32 %v295
    %vm302 = vcmp.lt.s32.totalorder %v278, 64
    %v303 = vsel %vm302, %v301, %v300
    %304 = vst [vmem:[#allocation7] sm:$0xff] %v303
    // Predicated region
    $region42: #{tpu_custom_call.1} parent=1 // pred_check
      _
    $region43: #{tpu_custom_call.1} parent=1 // pred_check_branch
      %306 = sbr.rel (0) target = $region45
    $region44: #{tpu_custom_call.1} parent=1 // pred_region
      %s308 = ssub.s32 128, 128
      %309 = vsyncadd [#allocation4], %s308
      %s311 = sshll.u32 [#allocation7], 4
      %s312 = int_to_ptr.vmem [resolvable:$true] %s311
      %314 = dma.vmem_to_hbm [thread:$0]  %s312, 128, %s8, [#allocation4]
    $region45: #{tpu_custom_call.1} parent=1 // pred_fallthru
      _
    // Predicated region
    $region46: #{tpu_custom_call.1} parent=1 // pred_check
      _
    $region47: #{tpu_custom_call.1} parent=1 // pred_check_branch
      %316 = sbr.rel (0) target = $region49
    $region48: #{tpu_custom_call.1} parent=1 // pred_region
      %317 = dma.done [#allocation4], 128
    $region49: #{tpu_custom_call.1} parent=1 // pred_fallthru
      _
    %318 = vsyncpa [#allocation3], 1
    %319 = vsyncpa [#allocation6], 1
    %320 = vsyncpa [#allocation4], 1

</llo_original>
